<compile_context>
chip_gen: v5e
topology: v5e:2x2
jax: 0.10.0
libtpu: 0.0.40
codegen_flags: <defaults>
</compile_context>

<pallas_src>
import jax
import jax.numpy as jnp
from jax.experimental import pallas as pl
from jax.experimental.pallas import tpu as pltpu


def _temporal_attention_kernel(z_ref, w_ref, o_ref):
    zc = z_ref[...]                                   # (tb, T, D) native dtype
    tb, t_len, d_model = zc.shape
    w = w_ref[...]                                    # (D, D)

    # h = z @ W on the MXU, f32 accumulation.  When T is sublane-aligned we
    # merge (tb, T) into one big M dimension for a single matmul.
    if t_len % 8 == 0:
        h = jnp.dot(zc.reshape(tb * t_len, d_model), w,
                    preferred_element_type=jnp.float32)
        h = h.reshape(tb, t_len, d_model)
    else:
        h = jnp.einsum("btd,de->bte", zc, w,
                       preferred_element_type=jnp.float32)

    # Attention logits: dot product of every timestep's h with the last one.
    q = h[:, t_len - 1:t_len, :]                      # (tb, 1, D)
    lam = jnp.sum(h * q, axis=-1, keepdims=True)      # (tb, T, 1)

    # Numerically stable softmax over the time (sublane) axis.
    m = jnp.max(lam, axis=1, keepdims=True)           # (tb, 1, 1)
    e = jnp.exp(lam - m)                              # (tb, T, 1)
    s = jnp.sum(e, axis=1, keepdims=True)             # (tb, 1, 1)
    alpha = e * pl.reciprocal(s, approx=False)        # (tb, T, 1)

    # Weighted sum of the *input* z over time.
    zf = zc.astype(jnp.float32)
    out = jnp.sum(alpha * zf, axis=1)                 # (tb, D)
    o_ref[...] = out.astype(o_ref.dtype)


def _pick_batch_tile(batch, seq, d_model, itemsize):
    """Largest batch tile whose double-buffered z block stays inside VMEM."""
    # ~16 MiB for the double-buffered z tile keeps the total (z + resident W +
    # double-buffered out) comfortably under the 32 MiB scoped limit requested
    # below -> safe on v5e/v6e (128 MiB physical) and v7x (64 MiB physical).
    budget = 16 * 1024 * 1024
    per_row = 2 * seq * d_model * itemsize            # double-buffered input
    cap = max(8, min(4096, budget // max(per_row, 1)))
    cap = (cap // 8) * 8
    if batch <= cap:
        return batch, batch                           # one block, no padding
    # Prefer a multiple-of-8 tile that divides the batch (avoids jnp.pad copy).
    tile = cap
    while tile >= 8:
        if batch % tile == 0:
            return tile, batch
        tile -= 8
    tile = cap
    return tile, pl.cdiv(batch, tile) * tile


def temporal_attention_forward(z, w, *, batch_tile=None):
    """z: (B, T, D);  w: (D, D) with h = z @ w  (== nn.Linear(D, D, bias=False))."""
    batch, seq, d_model = z.shape
    itemsize = jnp.dtype(z.dtype).itemsize

    if batch_tile is None:
        tile, padded = _pick_batch_tile(batch, seq, d_model, itemsize)
    else:
        tile = int(batch_tile)
        padded = pl.cdiv(batch, tile) * tile

    zp = z
    if padded != batch:
        # Only triggers when no multiple-of-8 tile divides the batch.
        zp = jnp.pad(z, ((0, padded - batch), (0, 0), (0, 0)))

    out = pl.pallas_call(
        _temporal_attention_kernel,
        out_shape=jax.ShapeDtypeStruct((padded, d_model), z.dtype),
        grid_spec=pltpu.PrefetchScalarGridSpec(
            num_scalar_prefetch=0,
            grid=(padded // tile,),
            in_specs=[
                pl.BlockSpec((tile, seq, d_model), lambda i: (i, 0, 0)),
                pl.BlockSpec((d_model, d_model), lambda i: (0, 0)),
            ],
            out_specs=pl.BlockSpec((tile, d_model), lambda i: (i, 0)),
        ),
        compiler_params=pltpu.CompilerParams(
            dimension_semantics=("parallel",),
            vmem_limit_bytes=32 * 1024 * 1024),
    )(zp, w)

    if padded != batch:
        out = out[:batch]
    return out


def temporal_attention_reference(z, w):
    hi = jax.lax.Precision.HIGHEST
    h = jnp.einsum("btd,de->bte", z, w, precision=hi)
    q = h[:, -1, :]
    lam = jnp.einsum("btd,bd->bt", h, q, precision=hi)
    alpha = jax.nn.softmax(lam, axis=1)
    return jnp.einsum("bt,btd->bd", alpha, z, precision=hi)


if __name__ == "__main__":
    batch, seq, d_model = 2, 8, 32

    key = jax.random.PRNGKey(0)
    kz, kw = jax.random.split(key)

    # w is transposed vs. PyTorch's nn.Linear.weight so that h = z @ w.
    bound = 1.0 / (d_model ** 0.5)
    w = jax.random.uniform(kw, (d_model, d_model), jnp.float32, -bound, bound)
    z = jax.random.normal(kz, (batch, seq, d_model), jnp.float32)

    out = temporal_attention_forward(z, w)
    out = jax.block_until_ready(out)

    ref = temporal_attention_reference(z, w)
    assert out.shape == (batch, d_model), out.shape
    max_err = float(jnp.max(jnp.abs(out - ref)))
    assert jnp.allclose(out, ref, atol=1e-3, rtol=1e-3), max_err

    print("KERNEL_OK")
</pallas_src>

<mosaic_0001>
module attributes {stable_mosaic.version = 11 : i64} {
  func.func @_temporal_attention_kernel(%arg0: i32, %arg1: memref<2x8x32xf32, #tpu.memory_space<vmem>>, %arg2: memref<32x32xf32, #tpu.memory_space<vmem>>, %arg3: memref<2x32xf32, #tpu.memory_space<vmem>>) attributes {dimension_semantics = [#tpu.dimension_semantics<parallel>], iteration_bounds = array<i64: 1>, scalar_prefetch = 0 : i64, scratch_operands = 0 : i64, tpu.core_type = #tpu.core_type<tc>, window_params = [{transform_indices = @transform_0, window_bounds = array<i64: 2, 8, 32>}, {pipeline_mode = #tpu.pipeline_mode<synchronous>, transform_indices = @transform_1, window_bounds = array<i64: 32, 32>}, {transform_indices = @transform_2, window_bounds = array<i64: 2, 32>}]} {
    %c0 = arith.constant 0 : index
    %c0_0 = arith.constant 0 : index
    %c0_1 = arith.constant 0 : index
    %0 = vector.load %arg1[%c0, %c0_0, %c0_1] : memref<2x8x32xf32, #tpu.memory_space<vmem>>, vector<2x8x32xf32>
    %c0_2 = arith.constant 0 : index
    %c0_3 = arith.constant 0 : index
    %1 = vector.load %arg2[%c0_2, %c0_3] : memref<32x32xf32, #tpu.memory_space<vmem>>, vector<32x32xf32>
    %2 = vector.shape_cast %0 : vector<2x8x32xf32> to vector<16x32xf32>
    %cst = arith.constant dense<0.000000e+00> : vector<16x32xf32>
    %3 = tpu.matmul %2, %1, %cst {dimension_numbers = #tpu.dot_dimension_numbers<[1], [0], [0], [1], [0, 0, 1, 1], [], []>} : vector<16x32xf32>, vector<32x32xf32>, vector<16x32xf32> -> vector<16x32xf32>
    %4 = vector.shape_cast %3 : vector<16x32xf32> to vector<2x8x32xf32>
    %5 = vector.extract_strided_slice %4 {offsets = [0, 7, 0], sizes = [2, 1, 32], strides = [1, 1, 1]} : vector<2x8x32xf32> to vector<2x1x32xf32>
    %6 = vector.broadcast %5 : vector<2x1x32xf32> to vector<2x8x32xf32>
    %7 = arith.mulf %4, %6 : vector<2x8x32xf32>
    %cst_4 = arith.constant dense<0.000000e+00> : vector<2x8xf32>
    %8 = vector.multi_reduction <add>, %7, %cst_4 [2] : vector<2x8x32xf32> to vector<2x8xf32>
    %9 = vector.shape_cast %8 : vector<2x8xf32> to vector<2x8x1xf32>
    %cst_5 = arith.constant dense<0xFF800000> : vector<2x1xf32>
    %10 = vector.multi_reduction <maximumf>, %9, %cst_5 [1] : vector<2x8x1xf32> to vector<2x1xf32>
    %11 = vector.shape_cast %10 : vector<2x1xf32> to vector<2x1x1xf32>
    %12 = vector.broadcast %11 : vector<2x1x1xf32> to vector<2x8x1xf32>
    %13 = arith.subf %9, %12 : vector<2x8x1xf32>
    %14 = math.exp %13 : vector<2x8x1xf32>
    %cst_6 = arith.constant dense<0.000000e+00> : vector<2x1xf32>
    %15 = vector.multi_reduction <add>, %14, %cst_6 [1] : vector<2x8x1xf32> to vector<2x1xf32>
    %16 = vector.shape_cast %15 : vector<2x1xf32> to vector<2x1x1xf32>
    %17 = tpu.reciprocal %16 : vector<2x1x1xf32> -> vector<2x1x1xf32>
    %18 = vector.broadcast %17 : vector<2x1x1xf32> to vector<2x8x1xf32>
    %19 = arith.mulf %14, %18 : vector<2x8x1xf32>
    %20 = vector.broadcast %19 : vector<2x8x1xf32> to vector<2x8x32xf32>
    %21 = arith.mulf %20, %0 : vector<2x8x32xf32>
    %cst_7 = arith.constant dense<0.000000e+00> : vector<2x32xf32>
    %22 = vector.multi_reduction <add>, %21, %cst_7 [1] : vector<2x8x32xf32> to vector<2x32xf32>
    %c0_8 = arith.constant 0 : index
    %c0_9 = arith.constant 0 : index
    %23 = vector.load %arg3[%c0_8, %c0_9] : memref<2x32xf32, #tpu.memory_space<vmem>>, vector<2x32xf32>
    tpu.vector_store %arg3[%c0_8, %c0_9], %22 {strides = array<i32>} : memref<2x32xf32, #tpu.memory_space<vmem>>, vector<2x32xf32>,
    return
  }
  func.func @transform_0(%arg0: i32) -> (i32, i32, i32) {
    %c0_i32 = arith.constant 0 : i32
    %c0_i32_0 = arith.constant 0 : i32
    %c0_i32_1 = arith.constant 0 : i32
    return %arg0, %c0_i32, %c0_i32_0 : i32, i32, i32
  }
  func.func @transform_1(%arg0: i32) -> (i32, i32) {
    %c0_i32 = arith.constant 0 : i32
    %c0_i32_0 = arith.constant 0 : i32
    %c0_i32_1 = arith.constant 0 : i32
    return %c0_i32, %c0_i32_0 : i32, i32
  }
  func.func @transform_2(%arg0: i32) -> (i32, i32) {
    %c0_i32 = arith.constant 0 : i32
    %c0_i32_0 = arith.constant 0 : i32
    return %arg0, %c0_i32 : i32, i32
  }
}

</mosaic_0001>

<llo_original>
// kernel: tpu_custom_call.1
$region0: #{tpu_custom_call.1}
  #allocation0 [shape = 'u32[]', space=smem, size = 0x4, offset = 0x4, fixed_abs, tag = 'smem constant byte address 0x4 - core index']
  #allocation1 [shape = 'u32[72,128]{1,0:T(1,128)}', space=vmem, size = 0x9000, scoped, tag = 'internal scratch']
  %s0 = inlined_call_operand.hbm [shape: f32[2,8,32], index: 0, kind: input, shape index: {}]
  %s1 = inlined_call_operand.hbm [shape: f32[32,32], index: 1, kind: input, shape index: {}]
  %s2 = inlined_call_operand.hbm [shape: f32[2,32], index: 2, kind: output, shape index: {}]
  %s3 = sld [smem:[#allocation0]]
  $region26: #{tpu_custom_call.1} parent=0
    _
  %s5 = ssub.s32 1, %s3
  %s6 = scalar_select 0, %s5, %s3
  $region1: #{tpu_custom_call.1} parent=0
    #allocation2 [shape = 'u8[8192]{0}', space=vmem, size = 0x2000, scoped, tag = 'input window, operand 0, single buffered']
    #allocation3 [shape = 's32[1]{0}', space=sflag, size = 0x4, scoped, tag = 'scoped memory for tpu_custom_call.1']
    #allocation4 [shape = 's32[1]{0}', space=sflag, size = 0x4, scoped, tag = 'scoped memory for tpu_custom_call.1']
    #allocation5 [shape = 'u8[16384]{0}', space=vmem, size = 0x4000, scoped, tag = 'input window, operand 1, single buffered']
    #allocation6 [shape = 's32[1]{0}', space=sflag, size = 0x4, scoped, tag = 'scoped memory for tpu_custom_call.1']
    #allocation7 [shape = 'u8[1024]{0}', space=vmem, size = 0x400, scoped, tag = 'output window, operand 0, single buffered']
    %7 = vsyncpa [#allocation3], 0
    %8 = vsyncpa [#allocation6], 0
    %9 = vsyncpa [#allocation4], 0
    // Predicated region
    $region2: #{tpu_custom_call.1} parent=1 // pred_check
      _
    $region3: #{tpu_custom_call.1} parent=1 // pred_check_branch
      %11 = sbr.rel (0) target = $region5
    $region4: #{tpu_custom_call.1} parent=1 // pred_region
      %13 = vsyncadd [#allocation3], 0
      %s14 = sshll.u32 %s0, 4
      %s15 = int_to_ptr.hbm [resolvable:$true] %s14
      %s16 = sshll.u32 [#allocation2], 4
      %s17 = int_to_ptr.vmem [resolvable:$true] %s16
      %22 = dma.hbm_to_vmem [thread:$0]  %s15, 256, %s17, [#allocation3], 128, 128, 8
    $region5: #{tpu_custom_call.1} parent=1 // pred_fallthru
      _
    // Predicated region
    $region6: #{tpu_custom_call.1} parent=1 // pred_check
      _
    $region7: #{tpu_custom_call.1} parent=1 // pred_check_branch
      %24 = sbr.rel (0) target = $region9
    $region8: #{tpu_custom_call.1} parent=1 // pred_region
      %26 = vsyncadd [#allocation6], 0
      %s27 = sshll.u32 %s1, 4
      %s28 = int_to_ptr.hbm [resolvable:$true] %s27
      %s29 = sshll.u32 [#allocation5], 4
      %s30 = int_to_ptr.vmem [resolvable:$true] %s29
      %35 = dma.hbm_to_vmem [thread:$0]  %s28, 512, %s30, [#allocation6], 128, 128, 8
    $region9: #{tpu_custom_call.1} parent=1 // pred_fallthru
      _
    // Predicated region
    $region10: #{tpu_custom_call.1} parent=1 // pred_check
      _
    $region11: #{tpu_custom_call.1} parent=1 // pred_check_branch
      %37 = sbr.rel (0) target = $region13
    $region12: #{tpu_custom_call.1} parent=1 // pred_region
      %39 = dma.done [#allocation3], 256
    $region13: #{tpu_custom_call.1} parent=1 // pred_fallthru
      _
    // Predicated region
    $region14: #{tpu_custom_call.1} parent=1 // pred_check
      _
    $region15: #{tpu_custom_call.1} parent=1 // pred_check_branch
      %41 = sbr.rel (0) target = $region17
    $region16: #{tpu_custom_call.1} parent=1 // pred_region
      %43 = dma.done [#allocation6], 512
    $region17: #{tpu_custom_call.1} parent=1 // pred_fallthru
      _
    %v44 = vld [vmem:[#allocation2] sm:$0xff]
    %v45 = vld [vmem:[#allocation2 + $0x8] sm:$0xff]
    %v46 = vld [vmem:[#allocation5] sm:$0xff]
    %v47 = vld [vmem:[#allocation5 + $0x8] sm:$0xff]
    %v48 = vld [vmem:[#allocation5 + $0x10] sm:$0xff]
    %v49 = vld [vmem:[#allocation5 + $0x18] sm:$0xff]
    %vm50 = vcmask 261120
    %v52 = vsel %vm50, %v44, 0
    %v55 = vsel %vm50, %v45, 0
    %57 = vmatpush.msra.mxu0 0.0
    %58 = vmatpush.msra.mxu0 0.0
    %59 = vmatpush.msra.mxu0 0.0
    %60 = vmatpush.msra.mxu0 0.0
    %61 = vmatpush.msra.mxu0 0.0
    %62 = vmatpush.msra.mxu0 0.0
    %63 = vmatpush.msra.mxu0 0.0
    %64 = vmatpush.msra.mxu0 0.0
    %65 = vmatpush.msra.mxu0 0.0
    %66 = vmatpush.msra.mxu0 0.0
    %67 = vmatpush.msra.mxu0 0.0
    %68 = vmatpush.msra.mxu0 0.0
    %69 = vmatpush.msra.mxu0 %v49
    %70 = vmatpush.msra.mxu0 %v48
    %71 = vmatpush.msra.mxu0 %v47
    %72 = vmatpush.msra.mxu0 %v46
    %73 = vmatmul.f32.gmra.mxu0 %v52
    %v74 = vpop.f32.mrf.mxu0
    %v75 = vadd.f32 0.0, %v74
    %76 = vmatmul.f32.gmra.mxu0 %v55
    %v77 = vpop.f32.mrf.mxu0
    %v78 = vadd.f32 0.0, %v77
    %79 = vdwg.mxu0
    %v80 = vperm.slane %v75, 7
    %v81 = vperm.slane %v78, 7
    %v82 = vmul.f32 %v75, %v80
    %v83 = vmul.f32 %v78, %v81
    %v84 = vsel %vm50, %v82, 0.0
    %85 = vadd.xlane.f32.xlu0 %v84
    %v86 = vpop.xlane.xlu0 %85
    %v87 = vsel %vm50, %v83, 0.0
    %88 = vadd.xlane.f32.xlu0 %v87
    %v89 = vpop.xlane.xlu0 %88
    %v90 = vrot.slane %v86, 4
    %v91 = vmax.f32 %v86, %v90
    %v92 = vrot.slane %v91, 2
    %v93 = vmax.f32 %v91, %v92
    %v94 = vrot.slane %v93, 1
    %v95 = vmax.f32 %v93, %v94
    %v96 = vrot.slane %v89, 4
    %v97 = vmax.f32 %v89, %v96
    %v98 = vrot.slane %v97, 2
    %v99 = vmax.f32 %v97, %v98
    %v100 = vrot.slane %v99, 1
    %v101 = vmax.f32 %v99, %v100
    %v102 = vsub.f32 %v86, %v95
    %v103 = vsub.f32 %v89, %v101
    %v104 = vmul.f32 %v102, 1.442695
    %v105 = vpow.pop %v104
    %v106 = vmul.f32 %v103, 1.442695
    %v107 = vpow.pop %v106
    %v108 = vrot.slane %v105, 4
    %v109 = vadd.f32 %v105, %v108
    %v110 = vrot.slane %v109, 2
    %v111 = vadd.f32 %v109, %v110
    %v112 = vrot.slane %v111, 1
    %v113 = vadd.f32 %v111, %v112
    %v114 = vrot.slane %v107, 4
    %v115 = vadd.f32 %v107, %v114
    %v116 = vrot.slane %v115, 2
    %v117 = vadd.f32 %v115, %v116
    %v118 = vrot.slane %v117, 1
    %v119 = vadd.f32 %v117, %v118
    %v120 = vrcp.pop %v113
    %v121 = vmul.f32 %v113, %v120
    %v122 = vsub.f32 1.0, %v121
    %v123 = vmul.f32 %v120, %v122
    %v124 = vadd.f32 %v120, %v123
    %vm125 = vweird.f32 %v113
    %vm126 = vweird.f32 %v120
    %vm127 = vmor %vm125, %vm126
    %v128 = vsel %vm127, %v120, %v124
    %v129 = vand.u32 2147483647, %v113
    %vm130 = vcmp.eq.f32.partialorder %v129, 8.507059e+37
    %v131 = vand.u32 %v113, 2147483648
    %v132 = vor.u32 1.1754944e-38, %v131
    %v133 = vsel %vm130, %v132, %v128
    %v134 = vrcp.pop %v119
    %v135 = vmul.f32 %v119, %v134
    %v136 = vsub.f32 1.0, %v135
    %v137 = vmul.f32 %v134, %v136
    %v138 = vadd.f32 %v134, %v137
    %vm139 = vweird.f32 %v119
    %vm140 = vweird.f32 %v134
    %vm141 = vmor %vm139, %vm140
    %v142 = vsel %vm141, %v134, %v138
    %v143 = vand.u32 2147483647, %v119
    %vm144 = vcmp.eq.f32.partialorder %v143, 8.507059e+37
    %v145 = vand.u32 %v119, 2147483648
    %v146 = vor.u32 1.1754944e-38, %v145
    %v147 = vsel %vm144, %v146, %v142
    %v148 = vmul.f32 %v105, %v133
    %v149 = vmul.f32 %v107, %v147
    %v150 = vmul.f32 %v148, %v44
    %v151 = vmul.f32 %v149, %v45
    %v152 = vsel %vm50, %v150, 0.0
    %v153 = vrot.slane %v152, 4
    %v154 = vadd.f32 %v152, %v153
    %v155 = vrot.slane %v154, 2
    %v156 = vadd.f32 %v154, %v155
    %v157 = vrot.slane %v156, 1
    %v158 = vadd.f32 %v156, %v157
    %v159 = vsel %vm50, %v151, 0.0
    %v160 = vrot.slane %v159, 4
    %v161 = vadd.f32 %v159, %v160
    %v162 = vrot.slane %v161, 2
    %v163 = vadd.f32 %v161, %v162
    %v164 = vrot.slane %v163, 1
    %v165 = vadd.f32 %v163, %v164
    %vm168 = vcmask 1041409
    %v169 = vsel %vm168, %v165, %v158
    %vm171 = vcmask 254976
    %172 = vst.msk [vmem:[#allocation7] sm:$0x3] %vm171, %v169
    // Predicated region
    $region18: #{tpu_custom_call.1} parent=1 // pred_check
      _
    $region19: #{tpu_custom_call.1} parent=1 // pred_check_branch
      %174 = sbr.rel (0) target = $region21
    $region20: #{tpu_custom_call.1} parent=1 // pred_region
      %176 = vsyncadd [#allocation4], 0
      %s178 = sshll.u32 [#allocation7], 4
      %s179 = int_to_ptr.vmem [resolvable:$true] %s178
      %s180 = sshll.u32 %s2, 4
      %s181 = int_to_ptr.hbm [resolvable:$true] %s180
      %183 = dma.vmem_to_hbm [thread:$0]  %s179, 32, %s181, [#allocation4]
    $region21: #{tpu_custom_call.1} parent=1 // pred_fallthru
      _
    // Predicated region
    $region22: #{tpu_custom_call.1} parent=1 // pred_check
      _
    $region23: #{tpu_custom_call.1} parent=1 // pred_check_branch
      %185 = sbr.rel (0) target = $region25
    $region24: #{tpu_custom_call.1} parent=1 // pred_region
      %187 = dma.done [#allocation4], 32
    $region25: #{tpu_custom_call.1} parent=1 // pred_fallthru
      _
    %188 = vsyncpa [#allocation3], 1
    %189 = vsyncpa [#allocation6], 1
    %190 = vsyncpa [#allocation4], 1

</llo_original>
